<compile_context>
chip_gen: v7x
topology: tpu7x:2x2x1
jax: 0.10.0
libtpu: 0.0.40
codegen_flags: <defaults>
</compile_context>

<pallas_src>
import jax
import jax.numpy as jnp
from jax.experimental import pallas as pl
from jax.experimental.pallas import tpu as pltpu


def _round_up(x, m):
    return ((x + m - 1) // m) * m


def _masked_power_loss_kernel(p_ref, yhat_ref, y_ref, mask_ref, num_ref, den_ref):
    """Accumulate per-column (8, td) partials across the row (reduction) axis."""
    i = pl.program_id(2)  # row tile index (last, "arbitrary" axis)

    @pl.when(i == 0)
    def _():
        num_ref[...] = jnp.zeros_like(num_ref)
        den_ref[...] = jnp.zeros_like(den_ref)

    p = p_ref[0]  # scalar exponent (SMEM, scalar prefetch)

    yhat = yhat_ref[...].astype(jnp.float32)
    yv = y_ref[...].astype(jnp.float32)
    m = mask_ref[...].astype(jnp.float32)

    diff = jnp.abs(yhat - yv)
    # |diff| ** p via EUP log/exp; single predicate-multiply keeps 0 ** p == 0.
    nzf = (diff > 0.0).astype(jnp.float32)
    powv = jnp.exp(p * jnp.log(jnp.maximum(diff, jnp.float32(1e-30))))
    contrib = m * powv * nzf

    tn, td = contrib.shape
    # Fold the row tile into the 8-sublane accumulator with VALU-only adds (no
    # per-step cross-sublane XLU reduce, no single-sublane masked stores).
    num_ref[...] += jnp.sum(contrib.reshape(tn // 8, 8, td), axis=0)
    den_ref[...] += jnp.sum(m.reshape(tn // 8, 8, td), axis=0)


def evolutive_masked_power_loss(y_hat, y, mask, p, *, td=512, tn=2048,
                                vmem_limit_bytes=48 * 1024 * 1024):
    """Pallas implementation of EvolutiveMaskedPowerLoss.forward.

    y_hat, y, mask: (N, D).  Any dtype (bf16 y/y_hat and int8 0/1 mask recommended
    to cut HBM traffic); math is done in f32 inside the kernel.
    """
    N, D = y_hat.shape
    if mask.dtype == jnp.bool_:
        mask = mask.astype(jnp.int8)  # exact for 0/1 masks, avoids bool blocks

    # ---- Column tiling: lane aligned, and >= 2 tiles whenever D > 128 so the
    # parallel column axis shards across both v7x TensorCores.
    if D >= 256:
        td = min(td, max(128, (D // 2) // 128 * 128))
    elif D >= 128:
        td = 128
    else:
        td = D
    n_col = -(-D // td)

    # ---- Row tiling: multiple of 32 (int8-safe sublane tile); shrink to keep the
    # double-buffered input working set comfortably inside VMEM (64 MiB on v7x).
    itemsz = y_hat.dtype.itemsize + y.dtype.itemsize + mask.dtype.itemsize
    tn = min(tn, _round_up(N, 32))
    tn = max(32, (tn // 32) * 32)
    input_budget = 40 * 1024 * 1024  # headroom under vmem_limit_bytes
    while tn > 32 and 2 * tn * td * itemsz > input_budget:
        tn = max(32, tn // 2)

    n_row_total = -(-N // tn)
    # If only one column tile, split rows into two parallel halves so both v7x
    # TensorCores still stream; partials are summed in the finalize.
    n_split = 2 if (n_col == 1 and n_row_total >= 2) else 1
    n_row = -(-n_row_total // n_split)

    Np, Dp = n_split * n_row * tn, n_col * td
    if (Np, Dp) != (N, D):
        # Zero padding is exact: padded rows/cols contribute 0 to num and den.
        pads = ((0, Np - N), (0, Dp - D))
        y_hat = jnp.pad(y_hat, pads)
        y = jnp.pad(y, pads)
        mask = jnp.pad(mask, pads)

    p_arr = jnp.asarray(p, jnp.float32).reshape((1,))

    in_map = lambda s, j, i, p_sm: (s * n_row + i, j)   # noqa: E731
    out_map = lambda s, j, i, p_sm: (s, j)              # noqa: E731

    n_elem = Np * Dp
    cost = pl.CostEstimate(
        flops=9 * n_elem,
        transcendentals=2 * n_elem,
        bytes_accessed=n_elem * itemsz + 2 * n_split * 8 * Dp * 4,
    )

    num, den = pl.pallas_call(
        _masked_power_loss_kernel,
        out_shape=(jax.ShapeDtypeStruct((n_split * 8, Dp), jnp.float32),
                   jax.ShapeDtypeStruct((n_split * 8, Dp), jnp.float32)),
        grid_spec=pltpu.PrefetchScalarGridSpec(
            num_scalar_prefetch=1,
            grid=(n_split, n_col, n_row),  # reduction (row) axis last
            in_specs=[
                pl.BlockSpec((tn, td), in_map),  # y_hat
                pl.BlockSpec((tn, td), in_map),  # y
                pl.BlockSpec((tn, td), in_map),  # mask
            ],
            out_specs=(pl.BlockSpec((8, td), out_map),
                       pl.BlockSpec((8, td), out_map)),
        ),
        compiler_params=pltpu.CompilerParams(
            dimension_semantics=("parallel", "parallel", "arbitrary"),
            vmem_limit_bytes=vmem_limit_bytes,
        ),
        cost_estimate=cost,
    )(p_arr, y_hat, y, mask)

    # Tiny finalize: fold splits + 8 sublanes, divide, mean.  Padded columns have
    # num = den = 0 and contribute 0.
    # TODO(synk): plain f32 accumulation; for N in the tens of millions consider
    # per-row-tile partial outputs or compensated summation.
    num_col = jnp.sum(num, axis=0)                    # (Dp,)
    den_col = jnp.sum(den, axis=0)                    # (Dp,)
    per_col = num_col / jnp.maximum(den_col, 1.0)     # = sum_N(w * |diff|^p) per column
    return jnp.sum(per_col) / jnp.float32(D)          # .sum(dim=0).mean()


def progressive_power_get(tks, epoch):
    """ProgressivePower.get(epoch) = sigmoid(tks - epoch).sum()  (sks unused)."""
    t = jnp.asarray(tks, jnp.float32)
    return jnp.sum(jax.nn.sigmoid(t - jnp.float32(epoch)))


if __name__ == "__main__":
    # Deterministic "parameter" init: ProgressivePower(tks=[1,3,5]); p = pows.get(1).
    tks = [1, 3, 5]
    p = progressive_power_get(tks, 1)

    # Small deterministic inputs, layout (N, D), deliberately not tile aligned.
    # Narrow HBM streams: y_hat / y as bf16, mask as int8 (exact for a 0/1 mask).
    N, D = 20, 200
    key = jax.random.PRNGKey(0)
    k1, k2, k3 = jax.random.split(key, 3)
    y_hat = jax.random.normal(k1, (N, D), dtype=jnp.float32).astype(jnp.bfloat16)
    y = jax.random.normal(k2, (N, D), dtype=jnp.float32).astype(jnp.bfloat16)
    mask = (jax.random.uniform(k3, (N, D)) < 0.7).astype(jnp.int8)

    loss = evolutive_masked_power_loss(y_hat, y, mask, p)
    jax.block_until_ready(loss)

    # Pure-JAX reference (same math as the PyTorch forward, same f32 compute dtype).
    yh_f, y_f, m_f = (a.astype(jnp.float32) for a in (y_hat, y, mask))
    w_ref = m_f / jnp.maximum(jnp.sum(m_f, axis=0), 1.0)
    ref = jnp.mean(jnp.sum(w_ref * jnp.abs(yh_f - y_f) ** p, axis=0))
    assert jnp.allclose(loss, ref, rtol=1e-4, atol=1e-5), (loss, ref)

    print("KERNEL_OK")
</pallas_src>

<mosaic_0001>
module attributes {stable_mosaic.version = 11 : i64} {
  func.func @_masked_power_loss_kernel(%arg0: i32, %arg1: i32, %arg2: i32, %arg3: memref<1xf32, #tpu.memory_space<smem>>, %arg4: memref<32x128xbf16, #tpu.memory_space<vmem>>, %arg5: memref<32x128xbf16, #tpu.memory_space<vmem>>, %arg6: memref<32x128xi8, #tpu.memory_space<vmem>>, %arg7: memref<8x128xf32, #tpu.memory_space<vmem>>, %arg8: memref<8x128xf32, #tpu.memory_space<vmem>>) attributes {dimension_semantics = [#tpu.dimension_semantics<parallel>, #tpu.dimension_semantics<parallel>, #tpu.dimension_semantics<arbitrary>], iteration_bounds = array<i64: 1, 2, 1>, scalar_prefetch = 1 : i64, scratch_operands = 0 : i64, tpu.core_type = #tpu.core_type<tc>, window_params = [{transform_indices = @transform_0, window_bounds = array<i64: 32, 128>}, {transform_indices = @transform_1, window_bounds = array<i64: 32, 128>}, {transform_indices = @transform_2, window_bounds = array<i64: 32, 128>}, {transform_indices = @transform_3, window_bounds = array<i64: 8, 128>}, {transform_indices = @transform_4, window_bounds = array<i64: 8, 128>}]} {
    %c0_i32 = arith.constant 0 : i32
    %0 = arith.cmpi eq, %arg2, %c0_i32 : i32
    %1 = arith.extui %0 : i1 to i32
    %c0_i32_0 = arith.constant 0 : i32
    %2 = arith.cmpi ne, %1, %c0_i32_0 : i32
    scf.if %2 {
      %cst_18 = arith.constant 0.000000e+00 : f32
      %34 = vector.broadcast %cst_18 : f32 to vector<8x128xf32>
      %c0_19 = arith.constant 0 : index
      %c0_20 = arith.constant 0 : index
      %35 = vector.load %arg7[%c0_19, %c0_20] : memref<8x128xf32, #tpu.memory_space<vmem>>, vector<8x128xf32>
      tpu.vector_store %arg7[%c0_19, %c0_20], %34 {strides = array<i32>} : memref<8x128xf32, #tpu.memory_space<vmem>>, vector<8x128xf32>,
      %cst_21 = arith.constant 0.000000e+00 : f32
      %36 = vector.broadcast %cst_21 : f32 to vector<8x128xf32>
      %c0_22 = arith.constant 0 : index
      %c0_23 = arith.constant 0 : index
      %37 = vector.load %arg8[%c0_22, %c0_23] : memref<8x128xf32, #tpu.memory_space<vmem>>, vector<8x128xf32>
      tpu.vector_store %arg8[%c0_22, %c0_23], %36 {strides = array<i32>} : memref<8x128xf32, #tpu.memory_space<vmem>>, vector<8x128xf32>,
    } else {
    }
    %c0 = arith.constant 0 : index
    %3 = memref.load %arg3[%c0] : memref<1xf32, #tpu.memory_space<smem>>
    %c0_1 = arith.constant 0 : index
    %c0_2 = arith.constant 0 : index
    %4 = vector.load %arg4[%c0_1, %c0_2] : memref<32x128xbf16, #tpu.memory_space<vmem>>, vector<32x128xbf16>
    %5 = arith.extf %4 : vector<32x128xbf16> to vector<32x128xf32>
    %c0_3 = arith.constant 0 : index
    %c0_4 = arith.constant 0 : index
    %6 = vector.load %arg5[%c0_3, %c0_4] : memref<32x128xbf16, #tpu.memory_space<vmem>>, vector<32x128xbf16>
    %7 = arith.extf %6 : vector<32x128xbf16> to vector<32x128xf32>
    %c0_5 = arith.constant 0 : index
    %c0_6 = arith.constant 0 : index
    %8 = vector.load %arg6[%c0_5, %c0_6] : memref<32x128xi8, #tpu.memory_space<vmem>>, vector<32x128xi8>
    %9 = arith.sitofp %8 : vector<32x128xi8> to vector<32x128xf32>
    %10 = arith.subf %5, %7 : vector<32x128xf32>
    %11 = math.absf %10 : vector<32x128xf32>
    %cst = arith.constant 0.000000e+00 : f32
    %12 = vector.broadcast %cst : f32 to vector<32x128xf32>
    %13 = arith.cmpf ogt, %11, %12 : vector<32x128xf32>
    %14 = arith.extui %13 : vector<32x128xi1> to vector<32x128xi32>
    %15 = arith.sitofp %14 : vector<32x128xi32> to vector<32x128xf32>
    %cst_7 = arith.constant 1.000000e-30 : f32
    %16 = vector.broadcast %cst_7 : f32 to vector<32x128xf32>
    %17 = arith.maximumf %11, %16 : vector<32x128xf32>
    %18 = math.log %17 : vector<32x128xf32>
    %19 = vector.broadcast %3 : f32 to vector<32x128xf32>
    %20 = arith.mulf %19, %18 : vector<32x128xf32>
    %21 = math.exp %20 : vector<32x128xf32>
    %22 = arith.mulf %9, %21 : vector<32x128xf32>
    %23 = arith.mulf %22, %15 : vector<32x128xf32>
    %c0_8 = arith.constant 0 : index
    %c0_9 = arith.constant 0 : index
    %24 = vector.load %arg7[%c0_8, %c0_9] : memref<8x128xf32, #tpu.memory_space<vmem>>, vector<8x128xf32>
    %25 = vector.shape_cast %23 : vector<32x128xf32> to vector<4x8x128xf32>
    %cst_10 = arith.constant dense<0.000000e+00> : vector<8x128xf32>
    %26 = vector.multi_reduction <add>, %25, %cst_10 [0] : vector<4x8x128xf32> to vector<8x128xf32>
    %27 = arith.addf %24, %26 : vector<8x128xf32>
    %c0_11 = arith.constant 0 : index
    %c0_12 = arith.constant 0 : index
    %28 = vector.load %arg7[%c0_11, %c0_12] : memref<8x128xf32, #tpu.memory_space<vmem>>, vector<8x128xf32>
    tpu.vector_store %arg7[%c0_11, %c0_12], %27 {strides = array<i32>} : memref<8x128xf32, #tpu.memory_space<vmem>>, vector<8x128xf32>,
    %c0_13 = arith.constant 0 : index
    %c0_14 = arith.constant 0 : index
    %29 = vector.load %arg8[%c0_13, %c0_14] : memref<8x128xf32, #tpu.memory_space<vmem>>, vector<8x128xf32>
    %30 = vector.shape_cast %9 : vector<32x128xf32> to vector<4x8x128xf32>
    %cst_15 = arith.constant dense<0.000000e+00> : vector<8x128xf32>
    %31 = vector.multi_reduction <add>, %30, %cst_15 [0] : vector<4x8x128xf32> to vector<8x128xf32>
    %32 = arith.addf %29, %31 : vector<8x128xf32>
    %c0_16 = arith.constant 0 : index
    %c0_17 = arith.constant 0 : index
    %33 = vector.load %arg8[%c0_16, %c0_17] : memref<8x128xf32, #tpu.memory_space<vmem>>, vector<8x128xf32>
    tpu.vector_store %arg8[%c0_16, %c0_17], %32 {strides = array<i32>} : memref<8x128xf32, #tpu.memory_space<vmem>>, vector<8x128xf32>,
    return
  }
  func.func @transform_0(%arg0: i32, %arg1: i32, %arg2: i32, %arg3: memref<1xf32, #tpu.memory_space<smem>>) -> (i32, i32) {
    %c1_i32 = arith.constant 1 : i32
    %0 = arith.muli %arg0, %c1_i32 : i32
    %1 = arith.addi %0, %arg2 : i32
    %c0_i32 = arith.constant 0 : i32
    return %1, %arg1 : i32, i32
  }
  func.func @transform_1(%arg0: i32, %arg1: i32, %arg2: i32, %arg3: memref<1xf32, #tpu.memory_space<smem>>) -> (i32, i32) {
    %c1_i32 = arith.constant 1 : i32
    %0 = arith.muli %arg0, %c1_i32 : i32
    %1 = arith.addi %0, %arg2 : i32
    %c0_i32 = arith.constant 0 : i32
    return %1, %arg1 : i32, i32
  }
  func.func @transform_2(%arg0: i32, %arg1: i32, %arg2: i32, %arg3: memref<1xf32, #tpu.memory_space<smem>>) -> (i32, i32) {
    %c1_i32 = arith.constant 1 : i32
    %0 = arith.muli %arg0, %c1_i32 : i32
    %1 = arith.addi %0, %arg2 : i32
    %c0_i32 = arith.constant 0 : i32
    return %1, %arg1 : i32, i32
  }
  func.func @transform_3(%arg0: i32, %arg1: i32, %arg2: i32, %arg3: memref<1xf32, #tpu.memory_space<smem>>) -> (i32, i32) {
    %c0_i32 = arith.constant 0 : i32
    return %arg0, %arg1 : i32, i32
  }
  func.func @transform_4(%arg0: i32, %arg1: i32, %arg2: i32, %arg3: memref<1xf32, #tpu.memory_space<smem>>) -> (i32, i32) {
    %c0_i32 = arith.constant 0 : i32
    return %arg0, %arg1 : i32, i32
  }
}

</mosaic_0001>

<llo_original>
// kernel: tpu_custom_call.1
$region0: #{tpu_custom_call.1}
  #allocation0 [shape = 'u32[]', space=smem, size = 0x4, offset = 0x4, fixed_abs, tag = 'smem constant byte address 0x4 - core index']
  #allocation1 [shape = 'u32[144,128]{1,0:T(1,128)}', space=vmem, size = 0x12000, scoped, tag = 'internal scratch']
  #allocation2 [shape = 's32[1]{0}', space=sflag, size = 0x4, scoped, tag = 'scoped memory for tpu_custom_call.1']
  #allocation3 [shape = 'f32[1]{0:T(128)S(6)}', space=smem, size = 0x200, scoped, tag = 'prefetched SMEM operand 0']
  %s0 = inlined_call_operand.<no memory space> [shape: f32[1], index: 0, kind: input, shape index: {}]
  %s1 = inlined_call_operand.hbm [shape: bf16[32,256], index: 1, kind: input, shape index: {}]
  %s2 = inlined_call_operand.hbm [shape: bf16[32,256], index: 2, kind: input, shape index: {}]
  %s3 = inlined_call_operand.hbm [shape: s8[32,256], index: 3, kind: input, shape index: {}]
  %s4 = inlined_call_operand.hbm [shape: f32[8,256], index: 4, kind: output, shape index: {0}]
  %s5 = inlined_call_operand.hbm [shape: f32[8,256], index: 5, kind: output, shape index: {1}]
  %6 = xla_tuple %s4, %s5
  %s7 = sld [smem:[#allocation0]]
  $region69: #{tpu_custom_call.1} parent=0
    _
  %s9 = ssub.s32 1, %s7
  %s10 = scalar_select 0, %s9, %s7
  %11 = sst [smem:[#allocation3]] %s0
  $region1: #{tpu_custom_call.1} parent=0
    #allocation4 [shape = 'u8[16384]{0}', space=vmem, size = 0x4000, scoped, tag = 'input window, operand 1']
    #allocation5 [shape = 's32[2]{0}', space=sflag, size = 0x8, scoped, tag = 'scoped memory for tpu_custom_call.1']
    #allocation6 [shape = 's32[2]{0}', space=sflag, size = 0x8, scoped, tag = 'scoped memory for tpu_custom_call.1']
    #allocation7 [shape = 'u8[16384]{0}', space=vmem, size = 0x4000, scoped, tag = 'input window, operand 2']
    #allocation8 [shape = 's32[2]{0}', space=sflag, size = 0x8, scoped, tag = 'scoped memory for tpu_custom_call.1']
    #allocation9 [shape = 'u8[8192]{0}', space=vmem, size = 0x2000, scoped, tag = 'input window, operand 3']
    #allocation10 [shape = 'u8[8192]{0}', space=vmem, size = 0x2000, scoped, tag = 'output window, operand 0']
    #allocation11 [shape = 'u8[8192]{0}', space=vmem, size = 0x2000, scoped, tag = 'output window, operand 1']
    #allocation12 [shape = 's32[2]{0}', space=sflag, size = 0x8, scoped, tag = 'scoped memory for tpu_custom_call.1']
    %12 = vsyncpa [#allocation5], 0
    %s13 = scalar_lea.sflag [#allocation5], 1
    %14 = vsyncpa %s13, 0
    %15 = vsyncpa [#allocation8], 0
    %s16 = scalar_lea.sflag [#allocation8], 1
    %17 = vsyncpa %s16, 0
    %18 = vsyncpa [#allocation6], 0
    %s19 = scalar_lea.sflag [#allocation6], 1
    %20 = vsyncpa %s19, 0
    %21 = vsyncpa [#allocation12], 0
    %s22 = scalar_lea.sflag [#allocation12], 1
    %23 = vsyncpa %s22, 0
    loop: start=0, step=1, limit=4
    $region2: #{tpu_custom_call.1} parent=1 // loop_pre_header
      _
    $region3: #{tpu_custom_call.1} parent=1 // loop_header
      %s25 = sphi 0, %s29
      %p26 = scmp.ge.s32.totalorder %s25, 4
      %s32 = sphi 0, %s51
      %s33 = sphi 0, %s47
      %s34 = sphi 0, %s43
      %s35 = sphi 0, %s32
      %s36 = sphi 0, %s33
      %s37 = sphi 0, %s34
      %s38 = sphi 0, %s35
      %s39 = sphi 0, %s36
      %s40 = sphi 0, %s37
      %s58 = sphi 0, %s60
      %s61 = sphi 0, %s58
      %s62 = sphi 0, %s61
      %s78 = sphi 0, %s62
      %s88 = sphi 0, %s90
      %s91 = sphi 0, %s88
      %s92 = sphi 0, %s91
      %s108 = sphi 0, %s92
      %s118 = sphi 0, %s120
      %s121 = sphi 0, %s118
      %s122 = sphi 0, %s121
      %s138 = sphi 0, %s122
      %s146 = sphi 0, %s148
      %s149 = sphi 0, %s146
      %s150 = sphi 0, %s149
      %s166 = sphi 0, %s150
      %s174 = sphi 0, %s176
      %s177 = sphi 0, %s174
      %s178 = sphi 0, %s177
      %s194 = sphi 0, %s178
    $region4: #{tpu_custom_call.1} parent=1 // loop_header_branch
      %28 = sbr.rel (%p26) target = $region8
    $region5: #{tpu_custom_call.1} parent=1 // loop_body
      %s30 = ssub.s32 %s25, 1
      %s31 = ssub.s32 %s25, 2
      %s41 = sadd.s32 1, %s34
      %p42 = scmp.ge.s32.totalorder %s41, 1
      %s43 = scalar_select %p42, 0, %s41
      %s44 = sadd.s32 1, %s33
      %s45 = scalar_select %p42, %s44, %s33
      %p46 = scmp.ge.s32.totalorder %s45, 2
      %s47 = scalar_select %p46, 0, %s45
      %s48 = sadd.s32 1, %s32
      %s49 = scalar_select %p46, %s48, %s32
      %p50 = scmp.ge.s32.totalorder %s49, 1
      %s51 = scalar_select %p50, 0, %s49
      %s52 = sadd.s32 %s32, %s34
      %s53 = sadd.s32 %s51, %s43
      %s54 = ssub.s32 %s52, %s53
      %s55 = ssub.s32 %s33, %s47
      %s56 = sor.u32 %s54, %s55
      %p57 = scmp.eq.s32.totalorder %s56, 0
      %s59 = sadd.s32 %s58, 1
      %s60 = scalar_select %p57, %s58, %s59
      %p63 = pneg %p57
      %p64 = scmp.eq.s32.totalorder %s25, 1
      %p65 = por %p63, %p64
      %p66 = scmp.ne.s32.totalorder %s58, %s61
      %p67 = scmp.eq.s32.totalorder %s25, 0
      %p68 = por %p66, %p67
      %p69 = scmp.ne.s32.totalorder %s58, %s61
      %p70 = scmp.eq.s32.totalorder %s30, 1
      %p71 = por %p69, %p70
      %p72 = scmp.ne.s32.totalorder %s61, %s62
      %p73 = scmp.eq.s32.totalorder %s30, 0
      %p74 = por %p72, %p73
      %p75 = scmp.ne.s32.totalorder %s61, %s62
      %p76 = scmp.eq.s32.totalorder %s31, 1
      %p77 = por %p75, %p76
      %p79 = scmp.ne.s32.totalorder %s62, %s78
      %p80 = scmp.eq.s32.totalorder %s31, 0
      %p81 = por %p79, %p80
      %s82 = sadd.s32 %s32, %s34
      %s83 = sadd.s32 %s51, %s43
      %s84 = ssub.s32 %s82, %s83
      %s85 = ssub.s32 %s33, %s47
      %s86 = sor.u32 %s84, %s85
      %p87 = scmp.eq.s32.totalorder %s86, 0
      %s89 = sadd.s32 %s88, 1
      %s90 = scalar_select %p87, %s88, %s89
      %p93 = pneg %p87
      %p94 = scmp.eq.s32.totalorder %s25, 1
      %p95 = por %p93, %p94
      %p96 = scmp.ne.s32.totalorder %s88, %s91
      %p97 = scmp.eq.s32.totalorder %s25, 0
      %p98 = por %p96, %p97
      %p99 = scmp.ne.s32.totalorder %s88, %s91
      %p100 = scmp.eq.s32.totalorder %s30, 1
      %p101 = por %p99, %p100
      %p102 = scmp.ne.s32.totalorder %s91, %s92
      %p103 = scmp.eq.s32.totalorder %s30, 0
      %p104 = por %p102, %p103
      %p105 = scmp.ne.s32.totalorder %s91, %s92
      %p106 = scmp.eq.s32.totalorder %s31, 1
      %p107 = por %p105, %p106
      %p109 = scmp.ne.s32.totalorder %s92, %s108
      %p110 = scmp.eq.s32.totalorder %s31, 0
      %p111 = por %p109, %p110
      %s112 = sadd.s32 %s32, %s34
      %s113 = sadd.s32 %s51, %s43
      %s114 = ssub.s32 %s112, %s113
      %s115 = ssub.s32 %s33, %s47
      %s116 = sor.u32 %s114, %s115
      %p117 = scmp.eq.s32.totalorder %s116, 0
      %s119 = sadd.s32 %s118, 1
      %s120 = scalar_select %p117, %s118, %s119
      %p123 = pneg %p117
      %p124 = scmp.eq.s32.totalorder %s25, 1
      %p125 = por %p123, %p124
      %p126 = scmp.ne.s32.totalorder %s118, %s121
      %p127 = scmp.eq.s32.totalorder %s25, 0
      %p128 = por %p126, %p127
      %p129 = scmp.ne.s32.totalorder %s118, %s121
      %p130 = scmp.eq.s32.totalorder %s30, 1
      %p131 = por %p129, %p130
      %p132 = scmp.ne.s32.totalorder %s121, %s122
      %p133 = scmp.eq.s32.totalorder %s30, 0
      %p134 = por %p132, %p133
      %p135 = scmp.ne.s32.totalorder %s121, %s122
      %p136 = scmp.eq.s32.totalorder %s31, 1
      %p137 = por %p135, %p136
      %p139 = scmp.ne.s32.totalorder %s122, %s138
      %p140 = scmp.eq.s32.totalorder %s31, 0
      %p141 = por %p139, %p140
      %s142 = ssub.s32 %s32, %s51
      %s143 = ssub.s32 %s33, %s47
      %s144 = sor.u32 %s142, %s143
      %p145 = scmp.eq.s32.totalorder %s144, 0
      %s147 = sadd.s32 %s146, 1
      %s148 = scalar_select %p145, %s146, %s147
      %p151 = pneg %p145
      %p152 = scmp.eq.s32.totalorder %s25, 1
      %p153 = por %p151, %p152
      %p154 = scmp.ne.s32.totalorder %s146, %s149
      %p155 = scmp.eq.s32.totalorder %s25, 0
      %p156 = por %p154, %p155
      %p157 = scmp.ne.s32.totalorder %s146, %s149
      %p158 = scmp.eq.s32.totalorder %s30, 1
      %p159 = por %p157, %p158
      %p160 = scmp.ne.s32.totalorder %s149, %s150
      %p161 = scmp.eq.s32.totalorder %s30, 0
      %p162 = por %p160, %p161
      %p163 = scmp.ne.s32.totalorder %s149, %s150
      %p164 = scmp.eq.s32.totalorder %s31, 1
      %p165 = por %p163, %p164
      %p167 = scmp.ne.s32.totalorder %s150, %s166
      %p168 = scmp.eq.s32.totalorder %s31, 0
      %p169 = por %p167, %p168
      %s170 = ssub.s32 %s32, %s51
      %s171 = ssub.s32 %s33, %s47
      %s172 = sor.u32 %s170, %s171
      %p173 = scmp.eq.s32.totalorder %s172, 0
      %s175 = sadd.s32 %s174, 1
      %s176 = scalar_select %p173, %s174, %s175
      %p179 = pneg %p173
      %p180 = scmp.eq.s32.totalorder %s25, 1
      %p181 = por %p179, %p180
      %p182 = scmp.ne.s32.totalorder %s174, %s177
      %p183 = scmp.eq.s32.totalorder %s25, 0
      %p184 = por %p182, %p183
      %p185 = scmp.ne.s32.totalorder %s174, %s177
      %p186 = scmp.eq.s32.totalorder %s30, 1
      %p187 = por %p185, %p186
      %p188 = scmp.ne.s32.totalorder %s177, %s178
      %p189 = scmp.eq.s32.totalorder %s30, 0
      %p190 = por %p188, %p189
      %p191 = scmp.ne.s32.totalorder %s177, %s178
      %p192 = scmp.eq.s32.totalorder %s31, 1
      %p193 = por %p191, %p192
      %p195 = scmp.ne.s32.totalorder %s178, %s194
      %p196 = scmp.eq.s32.totalorder %s31, 0
      %p197 = por %p195, %p196
      %p198 = scmp.le.s32.totalorder 1, %s25
      %p199 = scmp.lt.s32.totalorder %s25, 3
      %p200 = pnand %p198, %p199
      %p201 = pneg %p200
      // Predicated region
      $region9: #{tpu_custom_call.1} parent=5 // pred_check
        _
      $region10: #{tpu_custom_call.1} parent=5 // pred_check_branch
        %203 = sbr.rel (%p200) target = $region12
      $region11: #{tpu_custom_call.1} parent=5 // pred_region
        %s204 = ssub.s32 %s25, 1
      $region12: #{tpu_custom_call.1} parent=5 // pred_fallthru
        _
      %p205 = scmp.lt.s32.totalorder %s25, 2
      // Predicated region
      $region13: #{tpu_custom_call.1} parent=5 // pred_check
        %p206 = pneg %p205
      $region14: #{tpu_custom_call.1} parent=5 // pred_check_branch
        %208 = sbr.rel (%p206) target = $region16
      $region15: #{tpu_custom_call.1} parent=5 // pred_region
        // Predicated region
        $region17: #{tpu_custom_call.1} parent=15 // pred_check
          %p209 = pneg %p68
        $region18: #{tpu_custom_call.1} parent=15 // pred_check_branch
          %211 = sbr.rel (%p209) target = $region20
        $region19: #{tpu_custom_call.1} parent=15 // pred_region
          %s212 = sand.u32 %s58, 1
          %s213 = scalar_lea.sflag [#allocation5], %s212
          %s214 = sand.u32 %s58, 1
          %s215 = smul.addr %s214, 16
          %s216 = scalar_lea.vmem [#allocation4], %s215
          %s217 = sadd.s32 %s32, %s34
          %s218 = smul.u32 4, %s217
          %s220 = ssub.s32 256, 256
          %221 = vsyncadd %s213, %s220
          %s222 = smul.addr %s218, 2
          %s223 = sadd.s32 %s33, %s222
          %s224 = smul.addr %s223, 64
          %s225 = scalar_lea.hbm %s1, %s224
          %s226 = sshll.u32 %s216, 4
          %s227 = int_to_ptr.vmem [resolvable:$true] %s226
          %232 = dma.hbm_to_vmem [thread:$0]  %s225, 256, %s227, %s213, 128, 64, 4
        $region20: #{tpu_custom_call.1} parent=15 // pred_fallthru
          _
        // Predicated region
        $region21: #{tpu_custom_call.1} parent=15 // pred_check
          %p233 = pneg %p98
        $region22: #{tpu_custom_call.1} parent=15 // pred_check_branch
          %235 = sbr.rel (%p233) target = $region24
        $region23: #{tpu_custom_call.1} parent=15 // pred_region
          %s236 = sand.u32 %s25, 1
          %s237 = scalar_lea.sflag [#allocation8], %s236
          %s238 = sand.u32 %s88, 1
          %s239 = smul.addr %s238, 16
          %s240 = scalar_lea.vmem [#allocation7], %s239
          %s241 = sadd.s32 %s32, %s34
          %s242 = smul.u32 4, %s241
          %s244 = ssub.s32 256, 256
          %245 = vsyncadd %s237, %s244
          %s246 = smul.addr %s242, 2
          %s247 = sadd.s32 %s33, %s246
          %s248 = smul.addr %s247, 64
          %s249 = scalar_lea.hbm %s2, %s248
          %s250 = sshll.u32 %s240, 4
          %s251 = int_to_ptr.vmem [resolvable:$true] %s250
          %256 = dma.hbm_to_vmem [thread:$0]  %s249, 256, %s251, %s237, 128, 64, 4
        $region24: #{tpu_custom_call.1} parent=15 // pred_fallthru
          _
        // Predicated region
        $region25: #{tpu_custom_call.1} parent=15 // pred_check
          %p257 = pneg %p128
        $region26: #{tpu_custom_call.1} parent=15 // pred_check_branch
          %259 = sbr.rel (%p257) target = $region28
        $region27: #{tpu_custom_call.1} parent=15 // pred_region
          %s260 = sand.u32 %s25, 1
          %s261 = scalar_lea.sflag [#allocation8], %s260
          %s262 = sand.u32 %s118, 1
          %s263 = smul.addr %s262, 8
          %s264 = scalar_lea.vmem [#allocation9], %s263
          %s265 = sadd.s32 %s32, %s34
          %s267 = ssub.s32 128, 128
          %268 = vsyncadd %s261, %s267
          %s269 = smul.addr %s265, 2
          %s270 = sadd.s32 %s33, %s269
          %s271 = smul.addr %s270, 128
          %s272 = scalar_lea.hbm %s3, %s271
          %s274 = sshll.u32 %s264, 4
          %s275 = int_to_ptr.vmem [resolvable:$true] %s274
          %277 = dma.hbm_to_vmem [thread:$0]  %s272, 128, %s275, %s261
        $region28: #{tpu_custom_call.1} parent=15 // pred_fallthru
          _
      $region16: #{tpu_custom_call.1} parent=5 // pred_fallthru
        _
      %p278 = scmp.le.s32.totalorder 1, %s25
      %p279 = scmp.lt.s32.totalorder %s25, 3
      %p280 = pnand %p278, %p279
      %p281 = pneg %p280
      // Predicated region
      $region29: #{tpu_custom_call.1} parent=5 // pred_check
        _
      $region30: #{tpu_custom_call.1} parent=5 // pred_check_branch
        %283 = sbr.rel (%p280) target = $region32
      $region31: #{tpu_custom_call.1} parent=5 // pred_region
        %s284 = ssub.s32 %s25, 1
        %s285 = sand.u32 %s61, 1
        %s286 = scalar_lea.sflag [#allocation5], %s285
        %s287 = sand.u32 %s61, 1
        %s288 = smul.addr %s287, 16
        %s289 = scalar_lea.vmem [#allocation4], %s288
        // Predicated region
        $region33: #{tpu_custom_call.1} parent=31 // pred_check
          %p290 = pneg %p74
        $region34: #{tpu_custom_call.1} parent=31 // pred_check_branch
          %292 = sbr.rel (%p290) target = $region36
        $region35: #{tpu_custom_call.1} parent=31 // pred_region
          %293 = dma.done %s286, 256
        $region36: #{tpu_custom_call.1} parent=31 // pred_fallthru
          _
        %s294 = sand.u32 %s30, 1
        %s295 = scalar_lea.sflag [#allocation8], %s294
        %s296 = sand.u32 %s91, 1
        %s297 = smul.addr %s296, 16
        %s298 = scalar_lea.vmem [#allocation7], %s297
        // Predicated region
        $region37: #{tpu_custom_call.1} parent=31 // pred_check
          %p299 = pneg %p104
        $region38: #{tpu_custom_call.1} parent=31 // pred_check_branch
          %301 = sbr.rel (%p299) target = $region40
        $region39: #{tpu_custom_call.1} parent=31 // pred_region
          %302 = dma.done %s295, 256
        $region40: #{tpu_custom_call.1} parent=31 // pred_fallthru
          _
        %s303 = sand.u32 %s30, 1
        %s304 = scalar_lea.sflag [#allocation8], %s303
        %s305 = sand.u32 %s121, 1
        %s306 = smul.addr %s305, 8
        %s307 = scalar_lea.vmem [#allocation9], %s306
        // Predicated region
        $region41: #{tpu_custom_call.1} parent=31 // pred_check
          %p308 = pneg %p134
        $region42: #{tpu_custom_call.1} parent=31 // pred_check_branch
          %310 = sbr.rel (%p308) target = $region44
        $region43: #{tpu_custom_call.1} parent=31 // pred_region
          %311 = dma.done %s304, 128
        $region44: #{tpu_custom_call.1} parent=31 // pred_fallthru
          _
        %s312 = sand.u32 %s61, 1
        %s313 = scalar_lea.sflag [#allocation5], %s312
        %s314 = sand.u32 %s61, 1
        %s315 = smul.addr %s314, 16
        %s316 = scalar_lea.vmem [#allocation4], %s315
        %p317 = pneg %p74
        %p318 = pneg %p71
        %s319 = sand.u32 %s30, 1
        %s320 = scalar_lea.sflag [#allocation8], %s319
        %s321 = sand.u32 %s91, 1
        %s322 = smul.addr %s321, 16
        %s323 = scalar_lea.vmem [#allocation7], %s322
        %p324 = pneg %p104
        %p325 = pneg %p101
        %s326 = sand.u32 %s30, 1
        %s327 = scalar_lea.sflag [#allocation8], %s326
        %s328 = sand.u32 %s121, 1
        %s329 = smul.addr %s328, 8
        %s330 = scalar_lea.vmem [#allocation9], %s329
        %p331 = pneg %p134
        %p332 = pneg %p131
        %p333 = pneg %p162
        %p334 = pneg %p159
        %s335 = sand.u32 %s149, 1
        %s336 = scalar_lea.sflag [#allocation6], %s335
        %s337 = sand.u32 %s149, 1
        %s338 = smul.addr %s337, 8
        %s339 = scalar_lea.vmem [#allocation10], %s338
        %p340 = pneg %p190
        %p341 = pneg %p187
        %s342 = sand.u32 %s177, 1
        %s343 = scalar_lea.sflag [#allocation12], %s342
        %s344 = sand.u32 %s177, 1
        %s345 = smul.addr %s344, 8
        %s346 = scalar_lea.vmem [#allocation11], %s345
        %s347 = sadd.s32 %s35, %s37
        %s348 = smul.u32 4, %s347
        %s349 = sadd.s32 %s35, %s37
        %s350 = smul.u32 4, %s349
        %s351 = sadd.s32 %s35, %s37
        %p352 = scmp.eq.s32.totalorder %s37, 0
        // Predicated region
        $region45: #{tpu_custom_call.1} parent=31 // pred_check
          %p353 = pneg %p352
        $region46: #{tpu_custom_call.1} parent=31 // pred_check_branch
          %355 = sbr.rel (%p353) target = $region48
        $region47: #{tpu_custom_call.1} parent=31 // pred_region
          %356 = vst [vmem:[%s339] sm:$0xff] 0.0
          %357 = vst [vmem:[%s346] sm:$0xff] 0.0
        $region48: #{tpu_custom_call.1} parent=31 // pred_fallthru
          _
        %s358 = sld [smem:[#allocation3]]
        %v359 = vld [vmem:[%s289] sm:$0xf]
        %v360 = vld [vmem:[%s289 + $0x4] sm:$0xf]
        %v361 = vld [vmem:[%s289 + $0x8] sm:$0xf]
        %v362 = vld [vmem:[%s289 + $0xc] sm:$0xf]
        %v363 = vunpack.c.l.bf16 %v359
        %v364 = vunpack.c.l.bf16 %v360
        %v365 = vunpack.c.l.bf16 %v361
        %v366 = vunpack.c.l.bf16 %v362
        %v367 = vld [vmem:[%s298] sm:$0xf]
        %v368 = vld [vmem:[%s298 + $0x4] sm:$0xf]
        %v369 = vld [vmem:[%s298 + $0x8] sm:$0xf]
        %v370 = vld [vmem:[%s298 + $0xc] sm:$0xf]
        %v371 = vunpack.c.l.bf16 %v367
        %v372 = vunpack.c.l.bf16 %v368
        %v373 = vunpack.c.l.bf16 %v369
        %v374 = vunpack.c.l.bf16 %v370
        %v375 = vld [vmem:[%s307] sm:$0xff]
        %v376 = vunpack.c.0.s8 %v375
        %v377 = vunpack.c.1.s8 %v375
        %v378 = vunpack.c.2.s8 %v375
        %v379 = vunpack.c.3.s8 %v375
        %v380 = vcvt.s32.f32 %v376
        %v381 = vcvt.s32.f32 %v377
        %v382 = vcvt.s32.f32 %v378
        %v383 = vcvt.s32.f32 %v379
        %v384 = vsub.f32 %v363, %v371
        %v385 = vsub.f32 %v364, %v372
        %v386 = vsub.f32 %v365, %v373
        %v387 = vsub.f32 %v366, %v374
        %v388 = vand.u32 2147483647, %v384
        %v389 = vand.u32 2147483647, %v385
        %v390 = vand.u32 2147483647, %v386
        %v391 = vand.u32 2147483647, %v387
        %vm392 = vcmp.gt.f32.partialorder %v388, 0.0
        %vm393 = vcmp.gt.f32.partialorder %v389, 0.0
        %vm394 = vcmp.gt.f32.partialorder %v390, 0.0
        %vm395 = vcmp.gt.f32.partialorder %v391, 0.0
        %v396 = vsel %vm392, 1, 0
        %v397 = vsel %vm393, 1, 0
        %v398 = vsel %vm394, 1, 0
        %v399 = vsel %vm395, 1, 0
        %v400 = vcvt.s32.f32 %v396
        %v401 = vcvt.s32.f32 %v397
        %v402 = vcvt.s32.f32 %v398
        %v403 = vcvt.s32.f32 %v399
        %v404 = vmax.f32 %v388, 1e-30
        %v405 = vmax.f32 %v389, 1e-30
        %v406 = vmax.f32 %v390, 1e-30
        %v407 = vmax.f32 %v391, 1e-30
        %v408 = vlog2.pop %v404
        %v409 = vmul.f32 %v408, 0.6931472
        %v410 = vlog2.pop %v405
        %v411 = vmul.f32 %v410, 0.6931472
        %v412 = vlog2.pop %v406
        %v413 = vmul.f32 %v412, 0.6931472
        %v414 = vlog2.pop %v407
        %v415 = vmul.f32 %v414, 0.6931472
        %v416 = vstv %s358
        %v417 = vmul.f32 %v416, %v409
        %v418 = vmul.f32 %v416, %v411
        %v419 = vmul.f32 %v416, %v413
        %v420 = vmul.f32 %v416, %v415
        %v421 = vmul.f32 %v417, 1.442695
        %v422 = vpow.pop %v421
        %v423 = vmul.f32 %v418, 1.442695
        %v424 = vpow.pop %v423
        %v425 = vmul.f32 %v419, 1.442695
        %v426 = vpow.pop %v425
        %v427 = vmul.f32 %v420, 1.442695
        %v428 = vpow.pop %v427
        %v429 = vmul.f32 %v380, %v422
        %v430 = vmul.f32 %v381, %v424
        %v431 = vmul.f32 %v382, %v426
        %v432 = vmul.f32 %v383, %v428
        %v433 = vmul.f32 %v429, %v400
        %v434 = vmul.f32 %v430, %v401
        %v435 = vmul.f32 %v431, %v402
        %v436 = vmul.f32 %v432, %v403
        %v437 = vld [vmem:[%s339] sm:$0xff]
        %v438 = vadd.f32 %v433, %v434
        %v439 = vadd.f32 %v438, %v435
        %v440 = vadd.f32 %v439, %v436
        %v441 = vadd.f32 %v437, %v440
        %442 = vst [vmem:[%s339] sm:$0xff] %v441
        %v443 = vld [vmem:[%s346] sm:$0xff]
        %v444 = vadd.f32 %v380, %v381
        %v445 = vadd.f32 %v444, %v382
        %v446 = vadd.f32 %v445, %v383
        %v447 = vadd.f32 %v443, %v446
        %448 = vst [vmem:[%s346] sm:$0xff] %v447
        %s449 = sand.u32 %s149, 1
        %s450 = scalar_lea.sflag [#allocation6], %s449
        %s451 = sand.u32 %s149, 1
        %s452 = smul.addr %s451, 8
        %s453 = scalar_lea.vmem [#allocation10], %s452
        %s454 = sand.u32 %s177, 1
        %s455 = scalar_lea.sflag [#allocation12], %s454
        %s456 = sand.u32 %s177, 1
        %s457 = smul.addr %s456, 8
        %s458 = scalar_lea.vmem [#allocation11], %s457
        // Predicated region
        $region49: #{tpu_custom_call.1} parent=31 // pred_check
          %p459 = pneg %p159
        $region50: #{tpu_custom_call.1} parent=31 // pred_check_branch
          %461 = sbr.rel (%p459) target = $region52
        $region51: #{tpu_custom_call.1} parent=31 // pred_region
          %s463 = ssub.s32 128, 128
          %464 = vsyncadd %s450, %s463
          %s465 = smul.addr %s35, 2
          %s466 = sadd.s32 %s36, %s465
          %s467 = smul.addr %s466, 128
          %s468 = scalar_lea.hbm %s4, %s467
          %s470 = sshll.u32 %s453, 4
          %s471 = int_to_ptr.vmem [resolvable:$true] %s470
          %473 = dma.vmem_to_hbm [thread:$0]  %s471, 128, %s468, %s450
        $region52: #{tpu_custom_call.1} parent=31 // pred_fallthru
          _
        // Predicated region
        $region53: #{tpu_custom_call.1} parent=31 // pred_check
          %p474 = pneg %p187
        $region54: #{tpu_custom_call.1} parent=31 // pred_check_branch
          %476 = sbr.rel (%p474) target = $region56
        $region55: #{tpu_custom_call.1} parent=31 // pred_region
          %s478 = ssub.s32 128, 128
          %479 = vsyncadd %s455, %s478
          %s480 = smul.addr %s35, 2
          %s481 = sadd.s32 %s36, %s480
          %s482 = smul.addr %s481, 128
          %s483 = scalar_lea.hbm %s5, %s482
          %s485 = sshll.u32 %s458, 4
          %s486 = int_to_ptr.vmem [resolvable:$true] %s485
          %488 = dma.vmem_to_hbm [thread:$0]  %s486, 128, %s483, %s455
        $region56: #{tpu_custom_call.1} parent=31 // pred_fallthru
          _
      $region32: #{tpu_custom_call.1} parent=5 // pred_fallthru
        _
      %p489 = scmp.le.s32.totalorder 2, %s25
      // Predicated region
      $region57: #{tpu_custom_call.1} parent=5 // pred_check
        %p490 = pneg %p489
      $region58: #{tpu_custom_call.1} parent=5 // pred_check_branch
        %492 = sbr.rel (%p490) target = $region60
      $region59: #{tpu_custom_call.1} parent=5 // pred_region
        %s493 = ssub.s32 %s25, 2
        // Predicated region
        $region61: #{tpu_custom_call.1} parent=59 // pred_check
          %p494 = pneg %p165
        $region62: #{tpu_custom_call.1} parent=59 // pred_check_branch
          %496 = sbr.rel (%p494) target = $region64
        $region63: #{tpu_custom_call.1} parent=59 // pred_region
          %s497 = sand.u32 %s150, 1
          %s498 = scalar_lea.sflag [#allocation6], %s497
          %s499 = sand.u32 %s150, 1
          %s500 = smul.addr %s499, 8
          %s501 = scalar_lea.vmem [#allocation10], %s500
          %502 = dma.done %s498, 128
        $region64: #{tpu_custom_call.1} parent=59 // pred_fallthru
          _
        // Predicated region
        $region65: #{tpu_custom_call.1} parent=59 // pred_check
          %p503 = pneg %p193
        $region66: #{tpu_custom_call.1} parent=59 // pred_check_branch
          %505 = sbr.rel (%p503) target = $region68
        $region67: #{tpu_custom_call.1} parent=59 // pred_region
          %s506 = sand.u32 %s178, 1
          %s507 = scalar_lea.sflag [#allocation12], %s506
          %s508 = sand.u32 %s178, 1
          %s509 = smul.addr %s508, 8
          %s510 = scalar_lea.vmem [#allocation11], %s509
          %511 = dma.done %s507, 128
        $region68: #{tpu_custom_call.1} parent=59 // pred_fallthru
          _
      $region60: #{tpu_custom_call.1} parent=5 // pred_fallthru
        _
    $region6: #{tpu_custom_call.1} parent=1 // loop_footer
      %s29 = sadd.s32 1, %s25
    $region7: #{tpu_custom_call.1} parent=1 // loop_footer_branch
      %24 = sbr.rel target = $region3
    $region8: #{tpu_custom_call.1} parent=1 // loop_exit
      _
    %512 = vsyncpa [#allocation5], 1
    %s513 = scalar_lea.sflag [#allocation5], 1
    %514 = vsyncpa %s513, 1
    %515 = vsyncpa [#allocation8], 1
    %s516 = scalar_lea.sflag [#allocation8], 1
    %517 = vsyncpa %s516, 1
    %518 = vsyncpa [#allocation6], 1
    %s519 = scalar_lea.sflag [#allocation6], 1
    %520 = vsyncpa %s519, 1
    %521 = vsyncpa [#allocation12], 1
    %s522 = scalar_lea.sflag [#allocation12], 1
    %523 = vsyncpa %s522, 1

</llo_original>
